<compile_context>
chip_gen: v7x
topology: tpu7x:2x2x1
jax: 0.10.0
libtpu: 0.0.40
codegen_flags: <defaults>
</compile_context>

<pallas_src>
import functools

import jax
import jax.numpy as jnp
from jax.experimental import pallas as pl
from jax.experimental.pallas import tpu as pltpu


_LANE = 128


def _round_up(x, m):
    return ((x + m - 1) // m) * m


def _state_mlp_kernel(n_lin, hidden_bf16, *refs):
    """refs = (u_ref, w0, b0, ..., wL, bL, flux_ref, out_ref).

    u_ref    : (F, T)      -- features on sublanes, T spatial points on lanes
    hidden w : (out, in)   -- torch layout, used as  h <- tanh(w @ h + b)
    last w   : (in, 1)     -- pre-transposed; used as a sublane reduce
    biases   : (out, 1)
    flux/out : (1, T)      -- lane-dense
    """
    u_ref = refs[0]
    wb = refs[1:1 + 2 * n_lin]
    flux_ref = refs[1 + 2 * n_lin]
    out_ref = refs[2 + 2 * n_lin]

    h = u_ref[...].astype(jnp.float32)                       # (F, T)

    # Hidden layers on the MXU (K = F or num_nodes, N = T lane-dense).
    for li in range(n_lin - 1):
        w = wb[2 * li][...]                                   # (out, in)
        b = wb[2 * li + 1][...]                               # (out, 1)
        z = jnp.dot(w, h, preferred_element_type=jnp.float32) + b
        if hidden_bf16:
            # v6e/v7x EUP bf16 tanh path (~2x f32 rate). Final tanh + flux add
            # below stay f32.
            h = jnp.tanh(z.astype(jnp.bfloat16)).astype(jnp.float32)
        else:
            h = jnp.tanh(z)

    # Final width-1 layer: elementwise multiply + sublane reduction (VPU/XLU)
    # instead of a heavily padded N=1 MXU matmul.
    w_l = wb[2 * (n_lin - 1)][...]                            # (in, 1)
    b_l = wb[2 * (n_lin - 1) + 1][...]                        # (1, 1)
    r = jnp.sum(w_l * h, axis=0, keepdims=True) + b_l         # (1, T)
    out_ref[...] = flux_ref[...] + jnp.tanh(r)


def _vmem_budget_bytes():
    """Scoped-VMEM budget: half of physical, capped at 48 MiB.

    -> ~32 MiB on v7x (64 MiB physical), 48 MiB on v5e/v6e (128 MiB physical).
    """
    try:
        cap = int(getattr(pltpu.get_tpu_info(), "vmem_capacity_bytes", 64 << 20))
    except Exception:
        cap = 64 << 20
    return min(cap // 2, 48 << 20)


def state_kernels_forward(u_coupled, flux, weights, biases, *,
                          tile_cols=32768,
                          hidden_bf16=False,
                          cast_input_bf16=False,
                          core_parallel=False):
    """Pallas implementation of State_Kernels.forward with react_func=True.

    Args:
      u_coupled      : [F, Nx, Ny] float32
      flux           : [Nx, Ny]    float32
      weights        : list of torch-layout (out, in) float32 arrays
      biases         : list of (out,) float32 arrays
      tile_cols      : spatial points per grid step (lane-aligned, VMEM-capped)
      hidden_bf16    : run hidden-layer tanh in bf16 (v6e/v7x; ~1e-3 accuracy cost)
      cast_input_bf16: load u as bf16 (halves u HBM traffic; mainly a v5e win)
      core_parallel  : shard the column-tile grid axis across TensorCores (v7x)
    Returns:
      state : [Nx, Ny] float32  (= flux + react_nn(u).squeeze(-1))
    """
    F, Nx, Ny = u_coupled.shape
    rows = Nx * Ny
    n_lin = len(weights)

    # Free reshapes: no HBM transpose (u_coupled is already feature-major).
    u_flat = u_coupled.reshape(F, rows)
    flux_flat = flux.reshape(1, rows)
    if cast_input_bf16:
        u_flat = u_flat.astype(jnp.bfloat16)

    # --- tile / grid selection (lane axis, multiples of 128) ---------------
    budget = _vmem_budget_bytes()
    width = max([F] + [int(w.shape[0]) for w in weights])
    # Per-column VMEM estimate: ~3 live f32 activation slabs + double-buffered
    # u/flux/out tiles (conservatively counted as f32).
    per_col = 3 * width * 4 + 2 * (F + 2) * 4
    tc_cap = max(_LANE, ((budget - (2 << 20)) // per_col) // _LANE * _LANE)

    rows_128 = _round_up(rows, _LANE)
    tc = _round_up(min(tile_cols, rows_128), _LANE)
    tc = min(tc, tc_cap)
    n_tiles = pl.cdiv(rows, tc)
    # Balance tiles across the grid while staying lane-aligned (never exceeds
    # the requested/capped tc, and keeps the same number of grid steps).
    tc = _round_up(pl.cdiv(rows, n_tiles), _LANE)
    # If n_tiles * tc > rows, the last tile is ragged: Pallas masks the
    # out-of-bounds lanes (no wrapper-side jnp.pad HBM copy).  Columns are
    # independent, so garbage in masked lanes cannot affect valid outputs.

    # --- parameters: hidden weights (out, in); last weight pre-transposed to
    #     (in, 1) for the in-kernel sublane reduce; biases as (out, 1).
    wb_args = []
    for li, (w, b) in enumerate(zip(weights, biases)):
        w = jnp.asarray(w, jnp.float32)
        wb_args.append(w.T if li == n_lin - 1 else w)
        wb_args.append(jnp.asarray(b, jnp.float32).reshape(-1, 1))

    # Weights/biases are tiny: keep them VMEM-resident for the whole grid.
    resident = pl.BlockSpec(memory_space=pltpu.MemorySpace.VMEM)

    in_specs = [pl.BlockSpec((F, tc), lambda i: (0, i))]
    in_specs += [resident] * (2 * n_lin)
    in_specs.append(pl.BlockSpec((1, tc), lambda i: (0, i)))

    # v7x: pltpu.CORE_PARALLEL splits the independent column tiles across the
    # chip's 2 TensorCores; plain "parallel" elsewhere (near-no-op on 1-TC chips).
    dim_sem = (pltpu.CORE_PARALLEL,) if core_parallel else ("parallel",)

    kernel = functools.partial(_state_mlp_kernel, n_lin, bool(hidden_bf16))

    out = pl.pallas_call(
        kernel,
        out_shape=jax.ShapeDtypeStruct((1, rows), jnp.float32),
        grid_spec=pltpu.PrefetchScalarGridSpec(
            num_scalar_prefetch=0,
            grid=(n_tiles,),
            in_specs=in_specs,
            out_specs=pl.BlockSpec((1, tc), lambda i: (0, i)),
        ),
        compiler_params=pltpu.CompilerParams(
            dimension_semantics=dim_sem,
            vmem_limit_bytes=int(budget),
        ),
    )(u_flat, *wb_args, flux_flat)

    return out.reshape(Nx, Ny)


def init_react_nn_params(key, num_layers, num_nodes, num_vars):
    """Deterministic React_NN parameters in torch layout: W (out, in), b (out,)."""
    weights, biases = [], []
    for i in range(num_layers + 1):
        in_f = num_vars if i == 0 else num_nodes
        out_f = 1 if i == num_layers else num_nodes
        key, kw, kb = jax.random.split(key, 3)
        bound = 1.0 / jnp.sqrt(jnp.float32(in_f))  # torch.nn.Linear default init range
        w = jax.random.uniform(kw, (out_f, in_f), jnp.float32, -bound, bound)
        b = jax.random.uniform(kb, (out_f,), jnp.float32, -bound, bound)
        weights.append(w)
        biases.append(b)
    return weights, biases


def reference_forward(u_coupled, flux, weights, biases):
    """Pure-JAX reference of State_Kernels.forward (react_func=True)."""
    x = jnp.transpose(u_coupled, (1, 2, 0))  # [Nx, Ny, F]
    for w, b in zip(weights, biases):
        x = jnp.tanh(x @ w.T + b)            # torch layout: y = x @ W.T + b
    return flux + x[..., 0]


if __name__ == "__main__":
    # Config consistent with the module: num_layers_state=2, num_nodes_state=32,
    # len(state_couple_idx)=4 coupled features.
    num_layers, num_nodes, num_vars = 2, 32, 4

    key = jax.random.PRNGKey(0)
    key, kp = jax.random.split(key)
    weights, biases = init_react_nn_params(kp, num_layers, num_nodes, num_vars)

    # p_exp exists on the module but is unused in forward(); kept for parity.
    p_exp = jnp.array([1.0], dtype=jnp.float32)  # unused in forward
    del p_exp

    # --- 1) small 16x16 grid, f32 path (single 256-lane tile) ---------------
    key, ku, kf = jax.random.split(key, 3)
    u16 = jax.random.normal(ku, (num_vars, 16, 16), jnp.float32)
    f16 = jax.random.normal(kf, (16, 16), jnp.float32)
    out16 = jax.block_until_ready(state_kernels_forward(u16, f16, weights, biases))
    ref16 = reference_forward(u16, f16, weights, biases)
    assert out16.shape == (16, 16)
    assert jnp.allclose(out16, ref16, atol=1e-5, rtol=1e-5), (
        float(jnp.max(jnp.abs(out16 - ref16)))
    )

    # --- 2) multi-tile grid (2 x 32768-lane tiles), f32 path ----------------
    key, ku, kf = jax.random.split(key, 3)
    u256 = jax.random.normal(ku, (num_vars, 256, 256), jnp.float32)
    f256 = jax.random.normal(kf, (256, 256), jnp.float32)
    out256 = jax.block_until_ready(state_kernels_forward(u256, f256, weights, biases))
    ref256 = reference_forward(u256, f256, weights, biases)
    assert jnp.allclose(out256, ref256, atol=1e-5, rtol=1e-5), (
        float(jnp.max(jnp.abs(out256 - ref256)))
    )

    # --- 3) bf16 hidden tanh + bf16 u load (v6e/v7x EUP lever; looser tol) --
    out_bf16 = jax.block_until_ready(
        state_kernels_forward(u256, f256, weights, biases,
                              hidden_bf16=True, cast_input_bf16=True))
    assert jnp.allclose(out_bf16, ref256, atol=5e-2, rtol=5e-2), (
        float(jnp.max(jnp.abs(out_bf16 - ref256)))
    )

    print("KERNEL_OK")
</pallas_src>

<mosaic_0001>
module attributes {stable_mosaic.version = 11 : i64} {
  func.func @_state_mlp_kernel(%arg0: i32, %arg1: memref<4x256xf32, #tpu.memory_space<vmem>>, %arg2: memref<32x4xf32, #tpu.memory_space<vmem>>, %arg3: memref<32x1xf32, #tpu.memory_space<vmem>>, %arg4: memref<32x32xf32, #tpu.memory_space<vmem>>, %arg5: memref<32x1xf32, #tpu.memory_space<vmem>>, %arg6: memref<32x1xf32, #tpu.memory_space<vmem>>, %arg7: memref<1x1xf32, #tpu.memory_space<vmem>>, %arg8: memref<1x256xf32, #tpu.memory_space<vmem>>, %arg9: memref<1x256xf32, #tpu.memory_space<vmem>>) attributes {dimension_semantics = [#tpu.dimension_semantics<parallel>], iteration_bounds = array<i64: 1>, scalar_prefetch = 0 : i64, scratch_operands = 0 : i64, tpu.core_type = #tpu.core_type<tc>, window_params = [{transform_indices = @transform_0, window_bounds = array<i64: 4, 256>}, {pipeline_mode = #tpu.pipeline_mode<synchronous>, transform_indices = @transform_1, window_bounds = array<i64: 32, 4>}, {pipeline_mode = #tpu.pipeline_mode<synchronous>, transform_indices = @transform_2, window_bounds = array<i64: 32, 1>}, {pipeline_mode = #tpu.pipeline_mode<synchronous>, transform_indices = @transform_3, window_bounds = array<i64: 32, 32>}, {pipeline_mode = #tpu.pipeline_mode<synchronous>, transform_indices = @transform_4, window_bounds = array<i64: 32, 1>}, {pipeline_mode = #tpu.pipeline_mode<synchronous>, transform_indices = @transform_5, window_bounds = array<i64: 32, 1>}, {pipeline_mode = #tpu.pipeline_mode<synchronous>, transform_indices = @transform_6, window_bounds = array<i64: 1, 1>}, {transform_indices = @transform_7, window_bounds = array<i64: 1, 256>}, {transform_indices = @transform_8, window_bounds = array<i64: 1, 256>}]} {
    %c0 = arith.constant 0 : index
    %c0_0 = arith.constant 0 : index
    %0 = vector.load %arg1[%c0, %c0_0] : memref<4x256xf32, #tpu.memory_space<vmem>>, vector<4x256xf32>
    %c0_1 = arith.constant 0 : index
    %c0_2 = arith.constant 0 : index
    %1 = vector.load %arg2[%c0_1, %c0_2] : memref<32x4xf32, #tpu.memory_space<vmem>>, vector<32x4xf32>
    %c0_3 = arith.constant 0 : index
    %c0_4 = arith.constant 0 : index
    %2 = vector.load %arg3[%c0_3, %c0_4] : memref<32x1xf32, #tpu.memory_space<vmem>>, vector<32x1xf32>
    %cst = arith.constant dense<0.000000e+00> : vector<32x256xf32>
    %3 = tpu.matmul %1, %0, %cst {dimension_numbers = #tpu.dot_dimension_numbers<[1], [0], [0], [1], [0, 0, 1, 1], [], []>} : vector<32x4xf32>, vector<4x256xf32>, vector<32x256xf32> -> vector<32x256xf32>
    %4 = vector.broadcast %2 : vector<32x1xf32> to vector<32x256xf32>
    %5 = arith.addf %3, %4 : vector<32x256xf32>
    %6 = math.tanh %5 : vector<32x256xf32>
    %c0_5 = arith.constant 0 : index
    %c0_6 = arith.constant 0 : index
    %7 = vector.load %arg4[%c0_5, %c0_6] : memref<32x32xf32, #tpu.memory_space<vmem>>, vector<32x32xf32>
    %c0_7 = arith.constant 0 : index
    %c0_8 = arith.constant 0 : index
    %8 = vector.load %arg5[%c0_7, %c0_8] : memref<32x1xf32, #tpu.memory_space<vmem>>, vector<32x1xf32>
    %cst_9 = arith.constant dense<0.000000e+00> : vector<32x256xf32>
    %9 = tpu.matmul %7, %6, %cst_9 {dimension_numbers = #tpu.dot_dimension_numbers<[1], [0], [0], [1], [0, 0, 1, 1], [], []>} : vector<32x32xf32>, vector<32x256xf32>, vector<32x256xf32> -> vector<32x256xf32>
    %10 = vector.broadcast %8 : vector<32x1xf32> to vector<32x256xf32>
    %11 = arith.addf %9, %10 : vector<32x256xf32>
    %12 = math.tanh %11 : vector<32x256xf32>
    %c0_10 = arith.constant 0 : index
    %c0_11 = arith.constant 0 : index
    %13 = vector.load %arg6[%c0_10, %c0_11] : memref<32x1xf32, #tpu.memory_space<vmem>>, vector<32x1xf32>
    %c0_12 = arith.constant 0 : index
    %c0_13 = arith.constant 0 : index
    %14 = vector.load %arg7[%c0_12, %c0_13] : memref<1x1xf32, #tpu.memory_space<vmem>>, vector<1x1xf32>
    %15 = vector.broadcast %13 : vector<32x1xf32> to vector<32x256xf32>
    %16 = arith.mulf %15, %12 : vector<32x256xf32>
    %cst_14 = arith.constant dense<0.000000e+00> : vector<256xf32>
    %17 = vector.multi_reduction <add>, %16, %cst_14 [0] : vector<32x256xf32> to vector<256xf32>
    %18 = vector.shape_cast %17 : vector<256xf32> to vector<1x256xf32>
    %19 = vector.broadcast %14 : vector<1x1xf32> to vector<1x256xf32>
    %20 = arith.addf %18, %19 : vector<1x256xf32>
    %c0_15 = arith.constant 0 : index
    %c0_16 = arith.constant 0 : index
    %21 = vector.load %arg8[%c0_15, %c0_16] : memref<1x256xf32, #tpu.memory_space<vmem>>, vector<1x256xf32>
    %22 = math.tanh %20 : vector<1x256xf32>
    %23 = arith.addf %21, %22 : vector<1x256xf32>
    %c0_17 = arith.constant 0 : index
    %c0_18 = arith.constant 0 : index
    %24 = vector.load %arg9[%c0_17, %c0_18] : memref<1x256xf32, #tpu.memory_space<vmem>>, vector<1x256xf32>
    tpu.vector_store %arg9[%c0_17, %c0_18], %23 {strides = array<i32>} : memref<1x256xf32, #tpu.memory_space<vmem>>, vector<1x256xf32>,
    return
  }
  func.func @transform_0(%arg0: i32) -> (i32, i32) {
    %c0_i32 = arith.constant 0 : i32
    %c0_i32_0 = arith.constant 0 : i32
    return %c0_i32, %arg0 : i32, i32
  }
  func.func @transform_1(%arg0: i32) -> (i32, i32) {
    %c0_i32 = arith.constant 0 : i32
    %c0_i32_0 = arith.constant 0 : i32
    %c0_i32_1 = arith.constant 0 : i32
    return %c0_i32, %c0_i32_0 : i32, i32
  }
  func.func @transform_2(%arg0: i32) -> (i32, i32) {
    %c0_i32 = arith.constant 0 : i32
    %c0_i32_0 = arith.constant 0 : i32
    %c0_i32_1 = arith.constant 0 : i32
    return %c0_i32, %c0_i32_0 : i32, i32
  }
  func.func @transform_3(%arg0: i32) -> (i32, i32) {
    %c0_i32 = arith.constant 0 : i32
    %c0_i32_0 = arith.constant 0 : i32
    %c0_i32_1 = arith.constant 0 : i32
    return %c0_i32, %c0_i32_0 : i32, i32
  }
  func.func @transform_4(%arg0: i32) -> (i32, i32) {
    %c0_i32 = arith.constant 0 : i32
    %c0_i32_0 = arith.constant 0 : i32
    %c0_i32_1 = arith.constant 0 : i32
    return %c0_i32, %c0_i32_0 : i32, i32
  }
  func.func @transform_5(%arg0: i32) -> (i32, i32) {
    %c0_i32 = arith.constant 0 : i32
    %c0_i32_0 = arith.constant 0 : i32
    %c0_i32_1 = arith.constant 0 : i32
    return %c0_i32, %c0_i32_0 : i32, i32
  }
  func.func @transform_6(%arg0: i32) -> (i32, i32) {
    %c0_i32 = arith.constant 0 : i32
    %c0_i32_0 = arith.constant 0 : i32
    %c0_i32_1 = arith.constant 0 : i32
    return %c0_i32, %c0_i32_0 : i32, i32
  }
  func.func @transform_7(%arg0: i32) -> (i32, i32) {
    %c0_i32 = arith.constant 0 : i32
    %c0_i32_0 = arith.constant 0 : i32
    return %c0_i32, %arg0 : i32, i32
  }
  func.func @transform_8(%arg0: i32) -> (i32, i32) {
    %c0_i32 = arith.constant 0 : i32
    %c0_i32_0 = arith.constant 0 : i32
    return %c0_i32, %arg0 : i32, i32
  }
}

</mosaic_0001>

<llo_original>
// kernel: tpu_custom_call.1
$region0: #{tpu_custom_call.1}
  #allocation0 [shape = 'u32[]', space=smem, size = 0x4, offset = 0x4, fixed_abs, tag = 'smem constant byte address 0x4 - core index']
  #allocation1 [shape = 'u32[144,128]{1,0:T(1,128)}', space=vmem, size = 0x12000, scoped, tag = 'internal scratch']
  #allocation2 [shape = 'f32[1,1]{1,0:T(1,128)S(1)}', space=vmem, size = 0x200, scoped, tag = 'scoped memory for tpu_custom_call.1']
  %s0 = inlined_call_operand.vmem [shape: f32[4,256], index: 0, kind: input, shape index: {}]
  %s1 = inlined_call_operand.vmem [shape: f32[32,4], index: 1, kind: input, shape index: {}]
  %s2 = inlined_call_operand.vmem [shape: f32[32,1], index: 2, kind: input, shape index: {}]
  %s3 = inlined_call_operand.vmem [shape: f32[32,32], index: 3, kind: input, shape index: {}]
  %s4 = inlined_call_operand.vmem [shape: f32[32,1], index: 4, kind: input, shape index: {}]
  %s5 = inlined_call_operand.vmem [shape: f32[32,1], index: 5, kind: input, shape index: {}]
  %s6 = inlined_call_operand.<no memory space> [shape: f32[1,1], index: 6, kind: input, shape index: {}]
  %s7 = inlined_call_operand.vmem [shape: f32[1,256], index: 7, kind: input, shape index: {}]
  %s8 = inlined_call_operand.hbm [shape: f32[1,256], index: 8, kind: output, shape index: {}]
  %s9 = sld [smem:[#allocation0]]
  $region42: #{tpu_custom_call.1} parent=0
    _
  %s11 = ssub.s32 1, %s9
  %s12 = scalar_select 0, %s11, %s9
  %v13 = vstv %s6
  %14 = vst [vmem:[#allocation2] sm:$0x1] %v13
  $region1: #{tpu_custom_call.1} parent=0
    #allocation3 [shape = 'u8[1024]{0}', space=vmem, size = 0x400, scoped, tag = 'output window, operand 0, single buffered']
    #allocation4 [shape = 's32[1]{0}', space=sflag, size = 0x4, scoped, tag = 'scoped memory for tpu_custom_call.1']
    %15 = vsyncpa [#allocation4], 0
    // Predicated region
    $region2: #{tpu_custom_call.1} parent=1 // pred_check
      _
    $region3: #{tpu_custom_call.1} parent=1 // pred_check_branch
      %17 = sbr.rel (0) target = $region5
    $region4: #{tpu_custom_call.1} parent=1 // pred_region
      _
    $region5: #{tpu_custom_call.1} parent=1 // pred_fallthru
      _
    // Predicated region
    $region6: #{tpu_custom_call.1} parent=1 // pred_check
      _
    $region7: #{tpu_custom_call.1} parent=1 // pred_check_branch
      %19 = sbr.rel (0) target = $region9
    $region8: #{tpu_custom_call.1} parent=1 // pred_region
      _
    $region9: #{tpu_custom_call.1} parent=1 // pred_fallthru
      _
    // Predicated region
    $region10: #{tpu_custom_call.1} parent=1 // pred_check
      _
    $region11: #{tpu_custom_call.1} parent=1 // pred_check_branch
      %21 = sbr.rel (0) target = $region13
    $region12: #{tpu_custom_call.1} parent=1 // pred_region
      _
    $region13: #{tpu_custom_call.1} parent=1 // pred_fallthru
      _
    // Predicated region
    $region14: #{tpu_custom_call.1} parent=1 // pred_check
      _
    $region15: #{tpu_custom_call.1} parent=1 // pred_check_branch
      %23 = sbr.rel (0) target = $region17
    $region16: #{tpu_custom_call.1} parent=1 // pred_region
      _
    $region17: #{tpu_custom_call.1} parent=1 // pred_fallthru
      _
    // Predicated region
    $region18: #{tpu_custom_call.1} parent=1 // pred_check
      _
    $region19: #{tpu_custom_call.1} parent=1 // pred_check_branch
      %25 = sbr.rel (0) target = $region21
    $region20: #{tpu_custom_call.1} parent=1 // pred_region
      _
    $region21: #{tpu_custom_call.1} parent=1 // pred_fallthru
      _
    // Predicated region
    $region22: #{tpu_custom_call.1} parent=1 // pred_check
      _
    $region23: #{tpu_custom_call.1} parent=1 // pred_check_branch
      %27 = sbr.rel (0) target = $region25
    $region24: #{tpu_custom_call.1} parent=1 // pred_region
      _
    $region25: #{tpu_custom_call.1} parent=1 // pred_fallthru
      _
    // Predicated region
    $region26: #{tpu_custom_call.1} parent=1 // pred_check
      _
    $region27: #{tpu_custom_call.1} parent=1 // pred_check_branch
      %29 = sbr.rel (0) target = $region29
    $region28: #{tpu_custom_call.1} parent=1 // pred_region
      _
    $region29: #{tpu_custom_call.1} parent=1 // pred_fallthru
      _
    // Predicated region
    $region30: #{tpu_custom_call.1} parent=1 // pred_check
      _
    $region31: #{tpu_custom_call.1} parent=1 // pred_check_branch
      %31 = sbr.rel (0) target = $region33
    $region32: #{tpu_custom_call.1} parent=1 // pred_region
      _
    $region33: #{tpu_custom_call.1} parent=1 // pred_fallthru
      _
    %v32 = vld [vmem:[%s0] sm:$0xff]
    %v33 = vld [vmem:[%s1] sm:$0xff]
    %v34 = vld [vmem:[%s1 + $0x8] sm:$0xff]
    %v35 = vld [vmem:[%s1 + $0x10] sm:$0xff]
    %v36 = vld [vmem:[%s1 + $0x18] sm:$0xff]
    %v37 = vld [vmem:[%s2] sm:$0xff]
    %v38 = vld [vmem:[%s2 + $0x8] sm:$0xff]
    %v39 = vld [vmem:[%s2 + $0x10] sm:$0xff]
    %v40 = vld [vmem:[%s2 + $0x18] sm:$0xff]
    %42 = vset.pattern.permute.xlu0 0
    %43 = vperm.xlu0 %42, %v37
    %v44 = vpop.permute.xlu0 %43
    %47 = vset.pattern.permute.xlu0 0
    %48 = vperm.xlu0 %47, %v38
    %v49 = vpop.permute.xlu0 %48
    %52 = vset.pattern.permute.xlu0 0
    %53 = vperm.xlu0 %52, %v39
    %v54 = vpop.permute.xlu0 %53
    %57 = vset.pattern.permute.xlu0 0
    %58 = vperm.xlu0 %57, %v40
    %v59 = vpop.permute.xlu0 %58
    %v62 = vcombine.high %v32, %v32
    %vm63 = vcmask 31744
    %v65 = vsel %vm63, %v33, 0
    %v68 = vsel %vm63, %v34, 0
    %v71 = vsel %vm63, %v35, 0
    %v74 = vsel %vm63, %v36, 0
    %vm76 = vcmask 1043456
    %v77 = vsel %vm76, %v32, 0
    %v79 = vsel %vm76, %v62, 0
    %81 = vmatprep.subr.mxu0 %v79
    %82 = vmatpush1.msra.mxu0 %v77
    %83 = vmatprep.subr.mxu0 0.0
    %84 = vmatpush1.msra.mxu0 0.0
    %85 = vmatprep.subr.mxu0 0.0
    %86 = vmatpush1.msra.mxu0 0.0
    %87 = vmatprep.subr.mxu0 0.0
    %88 = vmatpush1.msra.mxu0 0.0
    %89 = vmatprep.subr.mxu0 0.0
    %90 = vmatpush1.msra.mxu0 0.0
    %91 = vmatprep.subr.mxu0 0.0
    %92 = vmatpush1.msra.mxu0 0.0
    %93 = vmatprep.subr.mxu0 0.0
    %94 = vmatpush1.msra.mxu0 0.0
    %95 = vmatprep.subr.mxu0 0.0
    %96 = vmatpush1.msra.mxu0 0.0
    %97 = vmatprep.subr.mxu0 0.0
    %98 = vmatpush1.msra.mxu0 0.0
    %99 = vmatprep.subr.mxu0 0.0
    %100 = vmatpush1.msra.mxu0 0.0
    %101 = vmatprep.subr.mxu0 0.0
    %102 = vmatpush1.msra.mxu0 0.0
    %103 = vmatprep.subr.mxu0 0.0
    %104 = vmatpush1.msra.mxu0 0.0
    %105 = vmatprep.subr.mxu0 0.0
    %106 = vmatpush1.msra.mxu0 0.0
    %107 = vmatprep.subr.mxu0 0.0
    %108 = vmatpush1.msra.mxu0 0.0
    %109 = vmatprep.subr.mxu0 0.0
    %110 = vmatpush1.msra.mxu0 0.0
    %111 = vmatprep.subr.mxu0 0.0
    %112 = vmatpush1.msra.mxu0 0.0
    %113 = vmatprep.subr.mxu0 0.0
    %114 = vmatpush1.msra.mxu0 0.0
    %115 = vmatprep.subr.mxu0 0.0
    %116 = vmatpush1.msra.mxu0 0.0
    %117 = vmatprep.subr.mxu0 0.0
    %118 = vmatpush1.msra.mxu0 0.0
    %119 = vmatprep.subr.mxu0 0.0
    %120 = vmatpush1.msra.mxu0 0.0
    %121 = vmatprep.subr.mxu0 0.0
    %122 = vmatpush1.msra.mxu0 0.0
    %123 = vmatprep.subr.mxu0 0.0
    %124 = vmatpush1.msra.mxu0 0.0
    %125 = vmatprep.subr.mxu0 0.0
    %126 = vmatpush1.msra.mxu0 0.0
    %127 = vmatprep.subr.mxu0 0.0
    %128 = vmatpush1.msra.mxu0 0.0
    %129 = vmatprep.subr.mxu0 0.0
    %130 = vmatpush1.msra.mxu0 0.0
    %131 = vmatprep.subr.mxu0 0.0
    %132 = vmatpush1.msra.mxu0 0.0
    %133 = vmatprep.subr.mxu0 0.0
    %134 = vmatpush1.msra.mxu0 0.0
    %135 = vmatprep.subr.mxu0 0.0
    %136 = vmatpush1.msra.mxu0 0.0
    %137 = vmatprep.subr.mxu0 0.0
    %138 = vmatpush1.msra.mxu0 0.0
    %139 = vmatprep.subr.mxu0 0.0
    %140 = vmatpush1.msra.mxu0 0.0
    %141 = vmatprep.subr.mxu0 0.0
    %142 = vmatpush1.msra.mxu0 0.0
    %143 = vmatprep.subr.mxu0 0.0
    %144 = vmatpush1.msra.mxu0 0.0
    %145 = vmatprep.mubr.f32.mxu0 0.0
    %146 = vmatmul.mubr.f32.gmra.mrb[0].mxu0 %v65
    %v147 = vpop.f32.mrb[0].mxu0
    %v148 = vadd.f32 %v44, %v147
    %v149 = vpop.f32.mrb[0].mxu0
    %v150 = vadd.f32 %v44, %v149
    %151 = vmatprep.mubr.f32.mxu0 0.0
    %152 = vmatmul.mubr.f32.gmra.mrb[0].mxu0 %v68
    %v153 = vpop.f32.mrb[0].mxu0
    %v154 = vadd.f32 %v49, %v153
    %v155 = vpop.f32.mrb[0].mxu0
    %v156 = vadd.f32 %v49, %v155
    %157 = vmatprep.mubr.f32.mxu0 0.0
    %158 = vmatmul.mubr.f32.gmra.mrb[0].mxu0 %v71
    %v159 = vpop.f32.mrb[0].mxu0
    %v160 = vadd.f32 %v54, %v159
    %v161 = vpop.f32.mrb[0].mxu0
    %v162 = vadd.f32 %v54, %v161
    %163 = vmatprep.mubr.f32.mxu0 0.0
    %164 = vmatmul.mubr.f32.gmra.mrb[0].mxu0 %v74
    %v165 = vpop.f32.mrb[0].mxu0
    %v166 = vadd.f32 %v59, %v165
    %v167 = vpop.f32.mrb[0].mxu0
    %v168 = vadd.f32 %v59, %v167
    %169 = vdwg.mxu0
    %v170 = vtanh.pop %v148
    %v171 = vtanh.pop %v150
    %v172 = vtanh.pop %v154
    %v173 = vtanh.pop %v156
    %v174 = vtanh.pop %v160
    %v175 = vtanh.pop %v162
    %v176 = vtanh.pop %v166
    %v177 = vtanh.pop %v168
    %v178 = vld [vmem:[%s3] sm:$0xff]
    %v179 = vld [vmem:[%s3 + $0x8] sm:$0xff]
    %v180 = vld [vmem:[%s3 + $0x10] sm:$0xff]
    %v181 = vld [vmem:[%s3 + $0x18] sm:$0xff]
    %v182 = vld [vmem:[%s4] sm:$0xff]
    %v183 = vld [vmem:[%s4 + $0x8] sm:$0xff]
    %v184 = vld [vmem:[%s4 + $0x10] sm:$0xff]
    %v185 = vld [vmem:[%s4 + $0x18] sm:$0xff]
    %187 = vset.pattern.permute.xlu0 0
    %188 = vperm.xlu0 %187, %v182
    %v189 = vpop.permute.xlu0 %188
    %192 = vset.pattern.permute.xlu0 0
    %193 = vperm.xlu0 %192, %v183
    %v194 = vpop.permute.xlu0 %193
    %197 = vset.pattern.permute.xlu0 0
    %198 = vperm.xlu0 %197, %v184
    %v199 = vpop.permute.xlu0 %198
    %202 = vset.pattern.permute.xlu0 0
    %203 = vperm.xlu0 %202, %v185
    %v204 = vpop.permute.xlu0 %203
    %vm206 = vcmask 261120
    %v208 = vsel %vm206, %v178, 0
    %v211 = vsel %vm206, %v179, 0
    %v214 = vsel %vm206, %v180, 0
    %v217 = vsel %vm206, %v181, 0
    %219 = vmatprep.subr.mxu0 %v171
    %220 = vmatpush1.msra.mxu0 %v170
    %221 = vmatprep.subr.mxu0 %v173
    %222 = vmatpush1.msra.mxu0 %v172
    %223 = vmatprep.subr.mxu0 %v175
    %224 = vmatpush1.msra.mxu0 %v174
    %225 = vmatprep.subr.mxu0 %v177
    %226 = vmatpush1.msra.mxu0 %v176
    %227 = vmatprep.subr.mxu0 0.0
    %228 = vmatpush1.msra.mxu0 0.0
    %229 = vmatprep.subr.mxu0 0.0
    %230 = vmatpush1.msra.mxu0 0.0
    %231 = vmatprep.subr.mxu0 0.0
    %232 = vmatpush1.msra.mxu0 0.0
    %233 = vmatprep.subr.mxu0 0.0
    %234 = vmatpush1.msra.mxu0 0.0
    %235 = vmatprep.subr.mxu0 0.0
    %236 = vmatpush1.msra.mxu0 0.0
    %237 = vmatprep.subr.mxu0 0.0
    %238 = vmatpush1.msra.mxu0 0.0
    %239 = vmatprep.subr.mxu0 0.0
    %240 = vmatpush1.msra.mxu0 0.0
    %241 = vmatprep.subr.mxu0 0.0
    %242 = vmatpush1.msra.mxu0 0.0
    %243 = vmatprep.subr.mxu0 0.0
    %244 = vmatpush1.msra.mxu0 0.0
    %245 = vmatprep.subr.mxu0 0.0
    %246 = vmatpush1.msra.mxu0 0.0
    %247 = vmatprep.subr.mxu0 0.0
    %248 = vmatpush1.msra.mxu0 0.0
    %249 = vmatprep.subr.mxu0 0.0
    %250 = vmatpush1.msra.mxu0 0.0
    %251 = vmatprep.subr.mxu0 0.0
    %252 = vmatpush1.msra.mxu0 0.0
    %253 = vmatprep.subr.mxu0 0.0
    %254 = vmatpush1.msra.mxu0 0.0
    %255 = vmatprep.subr.mxu0 0.0
    %256 = vmatpush1.msra.mxu0 0.0
    %257 = vmatprep.subr.mxu0 0.0
    %258 = vmatpush1.msra.mxu0 0.0
    %259 = vmatprep.subr.mxu0 0.0
    %260 = vmatpush1.msra.mxu0 0.0
    %261 = vmatprep.subr.mxu0 0.0
    %262 = vmatpush1.msra.mxu0 0.0
    %263 = vmatprep.subr.mxu0 0.0
    %264 = vmatpush1.msra.mxu0 0.0
    %265 = vmatprep.subr.mxu0 0.0
    %266 = vmatpush1.msra.mxu0 0.0
    %267 = vmatprep.subr.mxu0 0.0
    %268 = vmatpush1.msra.mxu0 0.0
    %269 = vmatprep.subr.mxu0 0.0
    %270 = vmatpush1.msra.mxu0 0.0
    %271 = vmatprep.subr.mxu0 0.0
    %272 = vmatpush1.msra.mxu0 0.0
    %273 = vmatprep.subr.mxu0 0.0
    %274 = vmatpush1.msra.mxu0 0.0
    %275 = vmatprep.subr.mxu0 0.0
    %276 = vmatpush1.msra.mxu0 0.0
    %277 = vmatprep.subr.mxu0 0.0
    %278 = vmatpush1.msra.mxu0 0.0
    %279 = vmatprep.subr.mxu0 0.0
    %280 = vmatpush1.msra.mxu0 0.0
    %281 = vmatprep.subr.mxu0 0.0
    %282 = vmatpush1.msra.mxu0 0.0
    %283 = vmatprep.mubr.f32.mxu0 0.0
    %284 = vmatmul.mubr.f32.gmra.mrb[0].mxu0 %v208
    %v285 = vpop.f32.mrb[0].mxu0
    %v286 = vadd.f32 %v189, %v285
    %v287 = vpop.f32.mrb[0].mxu0
    %v288 = vadd.f32 %v189, %v287
    %289 = vmatprep.mubr.f32.mxu0 0.0
    %290 = vmatmul.mubr.f32.gmra.mrb[0].mxu0 %v211
    %v291 = vpop.f32.mrb[0].mxu0
    %v292 = vadd.f32 %v194, %v291
    %v293 = vpop.f32.mrb[0].mxu0
    %v294 = vadd.f32 %v194, %v293
    %295 = vmatprep.mubr.f32.mxu0 0.0
    %296 = vmatmul.mubr.f32.gmra.mrb[0].mxu0 %v214
    %v297 = vpop.f32.mrb[0].mxu0
    %v298 = vadd.f32 %v199, %v297
    %v299 = vpop.f32.mrb[0].mxu0
    %v300 = vadd.f32 %v199, %v299
    %301 = vmatprep.mubr.f32.mxu0 0.0
    %302 = vmatmul.mubr.f32.gmra.mrb[0].mxu0 %v217
    %v303 = vpop.f32.mrb[0].mxu0
    %v304 = vadd.f32 %v204, %v303
    %v305 = vpop.f32.mrb[0].mxu0
    %v306 = vadd.f32 %v204, %v305
    %307 = vdwg.mxu0
    %v308 = vtanh.pop %v286
    %v309 = vtanh.pop %v288
    %v310 = vtanh.pop %v292
    %v311 = vtanh.pop %v294
    %v312 = vtanh.pop %v298
    %v313 = vtanh.pop %v300
    %v314 = vtanh.pop %v304
    %v315 = vtanh.pop %v306
    %v316 = vld [vmem:[%s5] sm:$0xff]
    %v317 = vld [vmem:[%s5 + $0x8] sm:$0xff]
    %v318 = vld [vmem:[%s5 + $0x10] sm:$0xff]
    %v319 = vld [vmem:[%s5 + $0x18] sm:$0xff]
    %v320 = vld [vmem:[#allocation2] sm:$0x1]
    %322 = vset.pattern.permute.xlu0 0
    %323 = vperm.xlu0 %322, %v316
    %v324 = vpop.permute.xlu0 %323
    %327 = vset.pattern.permute.xlu0 0
    %328 = vperm.xlu0 %327, %v317
    %v329 = vpop.permute.xlu0 %328
    %332 = vset.pattern.permute.xlu0 0
    %333 = vperm.xlu0 %332, %v318
    %v334 = vpop.permute.xlu0 %333
    %337 = vset.pattern.permute.xlu0 0
    %338 = vperm.xlu0 %337, %v319
    %v339 = vpop.permute.xlu0 %338
    %v341 = vmul.f32 %v324, %v308
    %v342 = vmul.f32 %v324, %v309
    %v343 = vmul.f32 %v329, %v310
    %v344 = vmul.f32 %v329, %v311
    %v345 = vmul.f32 %v334, %v312
    %v346 = vmul.f32 %v334, %v313
    %v347 = vmul.f32 %v339, %v314
    %v348 = vmul.f32 %v339, %v315
    %v349 = vadd.f32 %v341, %v343
    %v350 = vadd.f32 %v349, %v345
    %v351 = vadd.f32 %v350, %v347
    %v352 = vrot.slane %v351, 4
    %v353 = vadd.f32 %v351, %v352
    %v354 = vrot.slane %v353, 2
    %v355 = vadd.f32 %v353, %v354
    %v356 = vrot.slane %v355, 1
    %v357 = vadd.f32 %v355, %v356
    %v358 = vadd.f32 %v342, %v344
    %v359 = vadd.f32 %v358, %v346
    %v360 = vadd.f32 %v359, %v348
    %v361 = vrot.slane %v360, 4
    %v362 = vadd.f32 %v360, %v361
    %v363 = vrot.slane %v362, 2
    %v364 = vadd.f32 %v362, %v363
    %v365 = vrot.slane %v364, 1
    %v366 = vadd.f32 %v364, %v365
    %368 = vset.pattern.permute.xlu0 0
    %369 = vperm.xlu0 %368, %v320
    %v370 = vpop.permute.xlu0 %369
    %v372 = vlaneseq
    %v373 = vshrl.u32 %v372, 7
    %v374 = vsub.s32 0, %v373
    %v375 = vrot.slane %v370, %v374
    %v376 = vadd.f32 %v357, %v375
    %v377 = vadd.f32 %v366, %v375
    %v378 = vld [vmem:[%s7] sm:$0x3]
    %v379 = vtanh.pop %v376
    %v380 = vtanh.pop %v377
    %v383 = vcombine.low %v379, %v380
    %v385 = vunpack.c.l.s4 1966171168
    %v386 = vunpack.c.0.s8 %v385
    %v387 = vlaneseq
    %v388 = vshrl.u32 %v387, 7
    %v389 = vsub.s32 %v386, %v388
    %v390 = vrot.slane %v383, %v389
    %v392 = vunpack.c.l.s4 1966171168
    %v393 = vunpack.c.0.s8 %v392
    %v394 = vlaneseq
    %v395 = vshrl.u32 %v394, 7
    %v396 = vsub.s32 %v393, %v395
    %v397 = vrot.slane %v390, %v396
    %v399 = vadd.f32 %v378, %v397
    %v400 = vlaneseq
    %vm401 = vcmp.ge.s32.totalorder %v400, 0
    %vm402 = vcmp.lt.s32.totalorder %v400, 256
    %vm403 = vmand %vm401, %vm402
    %404 = vst.msk [vmem:[#allocation3] sm:$0x3] %vm403, %v399
    // Predicated region
    $region34: #{tpu_custom_call.1} parent=1 // pred_check
      _
    $region35: #{tpu_custom_call.1} parent=1 // pred_check_branch
      %406 = sbr.rel (0) target = $region37
    $region36: #{tpu_custom_call.1} parent=1 // pred_region
      %s408 = ssub.s32 32, 32
      %409 = vsyncadd [#allocation4], %s408
      %s411 = sshll.u32 [#allocation3], 4
      %s412 = int_to_ptr.vmem [resolvable:$true] %s411
      %414 = dma.vmem_to_hbm [thread:$0]  %s412, 32, %s8, [#allocation4]
    $region37: #{tpu_custom_call.1} parent=1 // pred_fallthru
      _
    // Predicated region
    $region38: #{tpu_custom_call.1} parent=1 // pred_check
      _
    $region39: #{tpu_custom_call.1} parent=1 // pred_check_branch
      %416 = sbr.rel (0) target = $region41
    $region40: #{tpu_custom_call.1} parent=1 // pred_region
      %417 = dma.done [#allocation4], 32
    $region41: #{tpu_custom_call.1} parent=1 // pred_fallthru
      _
    %418 = vsyncpa [#allocation4], 1

</llo_original>
